<compile_context>
chip_gen: v5e
topology: v5e:2x2
jax: 0.10.0
libtpu: 0.0.40
codegen_flags: <defaults>
</compile_context>

<pallas_src>
import functools
import math

import jax
import jax.numpy as jnp
from jax.experimental import pallas as pl
from jax.experimental.pallas import tpu as pltpu


def _decoder_kernel(n_layers, hidden_size, *refs):
    """refs = [tok (SMEM, (T,B) int32),
               emb (V,1,E), h0 (L,B,H), c0 (L,B,H),
               w_ih_0 (E,4H), (w_ih_rest (L-1,H,4H) if n_layers>1),
               w_hh (L,H,4H), b_all (L,1,4H), fc_w_t (H,Opad), fc_b (1,Opad),
               pred (1,B,Opad), hn (L,B,H), cn (L,B,H),
               h_state scratch (L,B,H) f32, c_state scratch (L,B,H) f32]"""
    H = hidden_size
    tok_ref, emb_ref, h0_ref, c0_ref, w_ih0_ref = refs[:5]
    pos = 5
    if n_layers > 1:
        w_ih_rest_ref = refs[pos]
        pos += 1
    else:
        w_ih_rest_ref = None
    w_hh_ref, b_ref, wfc_ref, bfc_ref = refs[pos:pos + 4]
    pred_ref, hn_ref, cn_ref, h_state, c_state = refs[pos + 4:pos + 9]

    t = pl.program_id(0)
    B = h_state.shape[1]

    # Load initial state into the VMEM-resident carry once.
    @pl.when(t == 0)
    def _init():
        h_state[...] = h0_ref[...]
        c_state[...] = c0_ref[...]

    # --- in-kernel embedding gather (dynamic leading-dim row loads) ---
    rows = [emb_ref[tok_ref[t, b]] for b in range(B)]        # each (1, E)
    x = jnp.concatenate(rows, axis=0) if B > 1 else rows[0]  # (B, E)
    # dropout(embedding) == identity (eval mode)

    for l in range(n_layers):
        h_prev = h_state[l]                                   # (B, H) f32
        c_prev = c_state[l]                                   # (B, H) f32
        w_ih = w_ih0_ref[...] if l == 0 else w_ih_rest_ref[l - 1]  # (Din, 4H)
        w_hh = w_hh_ref[l]                                    # (H, 4H)
        b = b_ref[l]                                          # (1, 4H), b_ih + b_hh

        # Two matmuls (no lane-axis concat); accumulate in f32 on the MXU.
        gates = (jnp.dot(x.astype(w_ih.dtype), w_ih,
                         preferred_element_type=jnp.float32)
                 + jnp.dot(h_prev.astype(w_hh.dtype), w_hh,
                           preferred_element_type=jnp.float32)
                 + b.astype(jnp.float32))                     # (B, 4H)

        # Host-side gate reorder to [i, f, o, g]: sigmoid over one contiguous (B,3H)
        # slice, tanh over the last (B,H). (At production sizes keep H % 128 == 0 so
        # each gate is whole vregs.)
        sig = jax.nn.sigmoid(gates[:, :3 * H])
        g_g = jnp.tanh(gates[:, 3 * H:])
        i_g = sig[:, 0 * H:1 * H]
        f_g = sig[:, 1 * H:2 * H]
        o_g = sig[:, 2 * H:3 * H]

        c_new = f_g * c_prev + i_g * g_g
        h_new = o_g * jnp.tanh(c_new)
        h_state[l] = h_new
        c_state[l] = c_new
        x = h_new  # inter-layer dropout = identity (eval mode)

    # final fully-connected layer (lane-dense padded output)
    pred_ref[0] = (jnp.dot(x.astype(wfc_ref.dtype), wfc_ref[...],
                           preferred_element_type=jnp.float32)
                   + bfc_ref[...].astype(jnp.float32))

    # Write the recurrent state out only once, on the last decode step.
    @pl.when(t == pl.num_programs(0) - 1)
    def _fin():
        hn_ref[...] = h_state[...]
        cn_ref[...] = c_state[...]


def decoder_decode(tok_ids, context, params, *, output_size=None):
    """Run T LSTM decode steps in a single pallas_call.

    tok_ids: (T, B) int32 token ids.  context: (h0, c0), each (n_layers, B, H) f32.
    Returns (pred (T, B, O), (hn, cn)).
    """
    h0, c0 = context
    n_layers, B, H = h0.shape
    T = tok_ids.shape[0]
    O_pad = params["fc_w_t"].shape[-1]

    inputs = [params["embedding"], h0, c0, params["w_ih_0"]]
    if n_layers > 1:
        inputs.append(params["w_ih_rest"])
    inputs += [params["w_hh"], params["b_all"], params["fc_w_t"], params["fc_b"]]

    def _resident_spec(arr):
        nd = arr.ndim
        # Constant block index across the T grid => DMA'd once, stays in VMEM.
        return pl.BlockSpec(arr.shape, lambda t, tok, _nd=nd: (0,) * _nd)

    in_specs = [_resident_spec(a) for a in inputs]
    out_shapes = (
        jax.ShapeDtypeStruct((T, B, O_pad), jnp.float32),                # pred
        jax.ShapeDtypeStruct((n_layers, B, H), jnp.float32),             # hn
        jax.ShapeDtypeStruct((n_layers, B, H), jnp.float32),             # cn
    )
    out_specs = (
        pl.BlockSpec((1, B, O_pad), lambda t, tok: (t, 0, 0)),
        pl.BlockSpec((n_layers, B, H), lambda t, tok: (0, 0, 0)),
        pl.BlockSpec((n_layers, B, H), lambda t, tok: (0, 0, 0)),
    )

    kernel = functools.partial(_decoder_kernel, n_layers, H)
    pred, hn, cn = pl.pallas_call(
        kernel,
        out_shape=out_shapes,
        grid_spec=pltpu.PrefetchScalarGridSpec(
            num_scalar_prefetch=1,
            grid=(T,),
            in_specs=in_specs,
            out_specs=out_specs,
            scratch_shapes=[pltpu.VMEM((n_layers, B, H), jnp.float32),
                            pltpu.VMEM((n_layers, B, H), jnp.float32)],
        ),
        compiler_params=pltpu.CompilerParams(
            dimension_semantics=("arbitrary",)),
        # hn/cn reuse the h0/c0 HBM buffers (indices count the scalar-prefetch arg 0).
        input_output_aliases={2: 1, 3: 2},
    )(tok_ids, *inputs)

    if output_size is not None:
        pred = pred[..., :output_size]
    return pred, (hn, cn)


def decoder_forward(x_ids, context, params, *, output_size):
    """Single decode step, matching PyTorch Decoder.forward: x_ids (B,) int32."""
    pred, ctx = decoder_decode(x_ids[None, :], context, params,
                               output_size=output_size)
    return pred[0], ctx


def init_decoder_params(key, input_size, embedding_size, hidden_size,
                        output_size, n_layers, weight_dtype=jnp.float32):
    """Deterministic synthetic params (PyTorch-like init), fused/packed for the kernel."""
    H = hidden_size
    params = {}
    k_emb, k_rnn, k_fc = jax.random.split(key, 3)

    emb = jax.random.normal(k_emb, (input_size, embedding_size), jnp.float32)
    # (V, 1, E): dynamic row gather via leading-dim indexing inside the kernel.
    params["embedding"] = emb.reshape(input_size, 1, embedding_size).astype(weight_dtype)

    # Column permutation: PyTorch gate order [i, f, g, o] -> kernel order [i, f, o, g].
    perm = jnp.concatenate([jnp.arange(0, 2 * H),
                            jnp.arange(3 * H, 4 * H),
                            jnp.arange(2 * H, 3 * H)])

    bound = 1.0 / math.sqrt(H)
    rnn_keys = jax.random.split(k_rnn, 4 * n_layers)
    w_ih_ts, w_hh_ts, biases = [], [], []
    for l in range(n_layers):
        in_dim = embedding_size if l == 0 else H
        w_ih = jax.random.uniform(rnn_keys[4 * l + 0], (4 * H, in_dim),
                                  jnp.float32, -bound, bound)
        w_hh = jax.random.uniform(rnn_keys[4 * l + 1], (4 * H, H),
                                  jnp.float32, -bound, bound)
        b_ih = jax.random.uniform(rnn_keys[4 * l + 2], (4 * H,),
                                  jnp.float32, -bound, bound)
        b_hh = jax.random.uniform(rnn_keys[4 * l + 3], (4 * H,),
                                  jnp.float32, -bound, bound)
        w_ih_ts.append(w_ih.T[:, perm])                        # (in_dim, 4H)
        w_hh_ts.append(w_hh.T[:, perm])                        # (H, 4H)
        biases.append((b_ih + b_hh)[perm].reshape(1, 4 * H))   # (1, 4H), f32

    params["w_ih_0"] = w_ih_ts[0].astype(weight_dtype)                     # (E, 4H)
    if n_layers > 1:
        params["w_ih_rest"] = jnp.stack(w_ih_ts[1:], 0).astype(weight_dtype)  # (L-1,H,4H)
    params["w_hh"] = jnp.stack(w_hh_ts, 0).astype(weight_dtype)            # (L, H, 4H)
    params["b_all"] = jnp.stack(biases, 0)                                 # (L, 1, 4H) f32

    k_fc_w, k_fc_b = jax.random.split(k_fc)
    fc_bound = 1.0 / math.sqrt(H)
    fc_w = jax.random.uniform(k_fc_w, (output_size, H), jnp.float32, -fc_bound, fc_bound)
    fc_b = jax.random.uniform(k_fc_b, (output_size,), jnp.float32, -fc_bound, fc_bound)
    O_pad = ((output_size + 127) // 128) * 128                 # lane-dense pred output
    params["fc_w_t"] = jnp.pad(fc_w.T, ((0, 0), (0, O_pad - output_size))).astype(weight_dtype)
    params["fc_b"] = jnp.pad(fc_b, (0, O_pad - output_size)).reshape(1, O_pad)
    return params


if __name__ == "__main__":
    # small shapes implied by the module
    input_size = 50       # vocab size
    embedding_size = 32
    hidden_size = 32
    output_size = 16
    n_layers = 2
    batch = 2

    key = jax.random.PRNGKey(0)
    k_params, k_x, k_seq, k_h, k_c = jax.random.split(key, 5)

    # f32 weights to match the PyTorch module numerics; pass weight_dtype=jnp.bfloat16
    # for the bf16-MXU / half-DMA path on v5e/v6e/v7x (gate math stays f32 either way).
    params = init_decoder_params(k_params, input_size, embedding_size,
                                 hidden_size, output_size, n_layers)

    x_ids = jax.random.randint(k_x, (batch,), 0, input_size, jnp.int32)
    h0 = jax.random.normal(k_h, (n_layers, batch, hidden_size), jnp.float32)
    c0 = jax.random.normal(k_c, (n_layers, batch, hidden_size), jnp.float32)

    # Single-step forward == the PyTorch module's forward.  Donate the context so
    # the h0/c0 -> hn/cn aliasing actually reuses the HBM buffers.
    @functools.partial(jax.jit, donate_argnums=(1,))
    def fwd(x_ids, context, params):
        return decoder_forward(x_ids, context, params, output_size=output_size)

    pred, (hn, cn) = fwd(x_ids, (h0, c0), params)
    jax.block_until_ready((pred, hn, cn))

    assert pred.shape == (batch, output_size)
    assert hn.shape == (n_layers, batch, hidden_size)
    assert cn.shape == (n_layers, batch, hidden_size)
    assert bool(jnp.all(jnp.isfinite(pred)))
    assert bool(jnp.all(jnp.isfinite(hn))) and bool(jnp.all(jnp.isfinite(cn)))

    # Multi-step decode (teacher-forced token ids): T steps in ONE pallas_call,
    # amortizing dispatch + weight DMA — the main structural optimization.
    T = 4
    tok_seq = jax.random.randint(k_seq, (T, batch), 0, input_size, jnp.int32)

    @jax.jit
    def decode_steps(tok_seq, context, params):
        return decoder_decode(tok_seq, context, params, output_size=output_size)

    preds_seq, (hn2, cn2) = decode_steps(tok_seq, (hn, cn), params)
    jax.block_until_ready((preds_seq, hn2, cn2))

    assert preds_seq.shape == (T, batch, output_size)
    assert hn2.shape == (n_layers, batch, hidden_size)
    assert bool(jnp.all(jnp.isfinite(preds_seq)))
    assert bool(jnp.all(jnp.isfinite(hn2))) and bool(jnp.all(jnp.isfinite(cn2)))

    print("KERNEL_OK")
</pallas_src>

<mosaic_0001>
module attributes {stable_mosaic.version = 11 : i64} {
  func.func @_decoder_kernel(%arg0: i32, %arg1: memref<1x2xi32, #tpu.memory_space<smem>>, %arg2: memref<50x1x32xf32, #tpu.memory_space<vmem>>, %arg3: memref<2x2x32xf32, #tpu.memory_space<vmem>>, %arg4: memref<2x2x32xf32, #tpu.memory_space<vmem>>, %arg5: memref<32x128xf32, #tpu.memory_space<vmem>>, %arg6: memref<1x32x128xf32, #tpu.memory_space<vmem>>, %arg7: memref<2x32x128xf32, #tpu.memory_space<vmem>>, %arg8: memref<2x1x128xf32, #tpu.memory_space<vmem>>, %arg9: memref<32x128xf32, #tpu.memory_space<vmem>>, %arg10: memref<1x128xf32, #tpu.memory_space<vmem>>, %arg11: memref<1x2x128xf32, #tpu.memory_space<vmem>>, %arg12: memref<2x2x32xf32, #tpu.memory_space<vmem>>, %arg13: memref<2x2x32xf32, #tpu.memory_space<vmem>>, %arg14: memref<2x2x32xf32, #tpu.memory_space<vmem>>, %arg15: memref<2x2x32xf32, #tpu.memory_space<vmem>>) attributes {dimension_semantics = [#tpu.dimension_semantics<arbitrary>], iteration_bounds = array<i64: 1>, scalar_prefetch = 1 : i64, scratch_operands = 2 : i64, tpu.core_type = #tpu.core_type<tc>, window_params = [{pipeline_mode = #tpu.pipeline_mode<synchronous>, transform_indices = @transform_0, window_bounds = array<i64: 50, 1, 32>}, {pipeline_mode = #tpu.pipeline_mode<synchronous>, transform_indices = @transform_1, window_bounds = array<i64: 2, 2, 32>}, {pipeline_mode = #tpu.pipeline_mode<synchronous>, transform_indices = @transform_2, window_bounds = array<i64: 2, 2, 32>}, {pipeline_mode = #tpu.pipeline_mode<synchronous>, transform_indices = @transform_3, window_bounds = array<i64: 32, 128>}, {pipeline_mode = #tpu.pipeline_mode<synchronous>, transform_indices = @transform_4, window_bounds = array<i64: 1, 32, 128>}, {pipeline_mode = #tpu.pipeline_mode<synchronous>, transform_indices = @transform_5, window_bounds = array<i64: 2, 32, 128>}, {pipeline_mode = #tpu.pipeline_mode<synchronous>, transform_indices = @transform_6, window_bounds = array<i64: 2, 1, 128>}, {pipeline_mode = #tpu.pipeline_mode<synchronous>, transform_indices = @transform_7, window_bounds = array<i64: 32, 128>}, {pipeline_mode = #tpu.pipeline_mode<synchronous>, transform_indices = @transform_8, window_bounds = array<i64: 1, 128>}, {transform_indices = @transform_9, window_bounds = array<i64: 1, 2, 128>}, {pipeline_mode = #tpu.pipeline_mode<synchronous>, transform_indices = @transform_10, window_bounds = array<i64: 2, 2, 32>}, {pipeline_mode = #tpu.pipeline_mode<synchronous>, transform_indices = @transform_11, window_bounds = array<i64: 2, 2, 32>}]} {
    %c0_i32 = arith.constant 0 : i32
    %0 = arith.cmpi eq, %arg0, %c0_i32 : i32
    %1 = arith.extui %0 : i1 to i32
    %c0_i32_0 = arith.constant 0 : i32
    %2 = arith.cmpi ne, %1, %c0_i32_0 : i32
    scf.if %2 {
      %c0_61 = arith.constant 0 : index
      %c0_62 = arith.constant 0 : index
      %c0_63 = arith.constant 0 : index
      %98 = vector.load %arg3[%c0_61, %c0_62, %c0_63] : memref<2x2x32xf32, #tpu.memory_space<vmem>>, vector<2x2x32xf32>
      %c0_64 = arith.constant 0 : index
      %c0_65 = arith.constant 0 : index
      %c0_66 = arith.constant 0 : index
      %99 = vector.load %arg14[%c0_64, %c0_65, %c0_66] : memref<2x2x32xf32, #tpu.memory_space<vmem>>, vector<2x2x32xf32>
      tpu.vector_store %arg14[%c0_64, %c0_65, %c0_66], %98 {strides = array<i32>} : memref<2x2x32xf32, #tpu.memory_space<vmem>>, vector<2x2x32xf32>,
      %c0_67 = arith.constant 0 : index
      %c0_68 = arith.constant 0 : index
      %c0_69 = arith.constant 0 : index
      %100 = vector.load %arg4[%c0_67, %c0_68, %c0_69] : memref<2x2x32xf32, #tpu.memory_space<vmem>>, vector<2x2x32xf32>
      %c0_70 = arith.constant 0 : index
      %c0_71 = arith.constant 0 : index
      %c0_72 = arith.constant 0 : index
      %101 = vector.load %arg15[%c0_70, %c0_71, %c0_72] : memref<2x2x32xf32, #tpu.memory_space<vmem>>, vector<2x2x32xf32>
      tpu.vector_store %arg15[%c0_70, %c0_71, %c0_72], %100 {strides = array<i32>} : memref<2x2x32xf32, #tpu.memory_space<vmem>>, vector<2x2x32xf32>,
    } else {
    }
    %3 = arith.index_cast %arg0 : i32 to index
    %c0 = arith.constant 0 : index
    %4 = memref.load %arg1[%3, %c0] : memref<1x2xi32, #tpu.memory_space<smem>>
    %5 = arith.index_cast %4 : i32 to index
    %c0_1 = arith.constant 0 : index
    %c0_2 = arith.constant 0 : index
    %6 = vector.load %arg2[%5, %c0_1, %c0_2] : memref<50x1x32xf32, #tpu.memory_space<vmem>>, vector<1x1x32xf32>
    %7 = vector.shape_cast %6 : vector<1x1x32xf32> to vector<1x32xf32>
    %8 = arith.index_cast %arg0 : i32 to index
    %c1 = arith.constant 1 : index
    %9 = memref.load %arg1[%8, %c1] : memref<1x2xi32, #tpu.memory_space<smem>>
    %10 = arith.index_cast %9 : i32 to index
    %c0_3 = arith.constant 0 : index
    %c0_4 = arith.constant 0 : index
    %11 = vector.load %arg2[%10, %c0_3, %c0_4] : memref<50x1x32xf32, #tpu.memory_space<vmem>>, vector<1x1x32xf32>
    %12 = vector.shape_cast %11 : vector<1x1x32xf32> to vector<1x32xf32>
    %13 = tpu.concatenate %7, %12 in 0 : vector<1x32xf32>, vector<1x32xf32> -> vector<2x32xf32>
    %c0_5 = arith.constant 0 : index
    %c0_6 = arith.constant 0 : index
    %c0_7 = arith.constant 0 : index
    %14 = vector.load %arg14[%c0_5, %c0_6, %c0_7] : memref<2x2x32xf32, #tpu.memory_space<vmem>>, vector<1x2x32xf32>
    %15 = vector.shape_cast %14 : vector<1x2x32xf32> to vector<2x32xf32>
    %c0_8 = arith.constant 0 : index
    %c0_9 = arith.constant 0 : index
    %c0_10 = arith.constant 0 : index
    %16 = vector.load %arg15[%c0_8, %c0_9, %c0_10] : memref<2x2x32xf32, #tpu.memory_space<vmem>>, vector<1x2x32xf32>
    %17 = vector.shape_cast %16 : vector<1x2x32xf32> to vector<2x32xf32>
    %c0_11 = arith.constant 0 : index
    %c0_12 = arith.constant 0 : index
    %18 = vector.load %arg5[%c0_11, %c0_12] : memref<32x128xf32, #tpu.memory_space<vmem>>, vector<32x128xf32>
    %c0_13 = arith.constant 0 : index
    %c0_14 = arith.constant 0 : index
    %c0_15 = arith.constant 0 : index
    %19 = vector.load %arg7[%c0_13, %c0_14, %c0_15] : memref<2x32x128xf32, #tpu.memory_space<vmem>>, vector<1x32x128xf32>
    %20 = vector.shape_cast %19 : vector<1x32x128xf32> to vector<32x128xf32>
    %c0_16 = arith.constant 0 : index
    %c0_17 = arith.constant 0 : index
    %c0_18 = arith.constant 0 : index
    %21 = vector.load %arg8[%c0_16, %c0_17, %c0_18] : memref<2x1x128xf32, #tpu.memory_space<vmem>>, vector<1x1x128xf32>
    %22 = vector.shape_cast %21 : vector<1x1x128xf32> to vector<1x128xf32>
    %cst = arith.constant dense<0.000000e+00> : vector<2x128xf32>
    %23 = tpu.matmul %13, %18, %cst {dimension_numbers = #tpu.dot_dimension_numbers<[1], [0], [0], [1], [0, 0, 1, 1], [], []>} : vector<2x32xf32>, vector<32x128xf32>, vector<2x128xf32> -> vector<2x128xf32>
    %cst_19 = arith.constant dense<0.000000e+00> : vector<2x128xf32>
    %24 = tpu.matmul %15, %20, %cst_19 {dimension_numbers = #tpu.dot_dimension_numbers<[1], [0], [0], [1], [0, 0, 1, 1], [], []>} : vector<2x32xf32>, vector<32x128xf32>, vector<2x128xf32> -> vector<2x128xf32>
    %25 = arith.addf %23, %24 : vector<2x128xf32>
    %26 = vector.broadcast %22 : vector<1x128xf32> to vector<2x128xf32>
    %27 = arith.addf %25, %26 : vector<2x128xf32>
    %28 = vector.extract_strided_slice %27 {offsets = [0, 0], sizes = [2, 96], strides = [1, 1]} : vector<2x128xf32> to vector<2x96xf32>
    %29 = arith.negf %28 : vector<2x96xf32>
    %30 = math.exp %29 : vector<2x96xf32>
    %cst_20 = arith.constant 1.000000e+00 : f32
    %31 = vector.broadcast %cst_20 : f32 to vector<2x96xf32>
    %32 = arith.addf %31, %30 : vector<2x96xf32>
    %33 = arith.divf %31, %32 : vector<2x96xf32>
    %34 = vector.extract_strided_slice %27 {offsets = [0, 96], sizes = [2, 32], strides = [1, 1]} : vector<2x128xf32> to vector<2x32xf32>
    %35 = math.tanh %34 : vector<2x32xf32>
    %36 = vector.extract_strided_slice %33 {offsets = [0, 0], sizes = [2, 32], strides = [1, 1]} : vector<2x96xf32> to vector<2x32xf32>
    %37 = vector.extract_strided_slice %33 {offsets = [0, 32], sizes = [2, 32], strides = [1, 1]} : vector<2x96xf32> to vector<2x32xf32>
    %38 = vector.extract_strided_slice %33 {offsets = [0, 64], sizes = [2, 32], strides = [1, 1]} : vector<2x96xf32> to vector<2x32xf32>
    %39 = arith.mulf %37, %17 : vector<2x32xf32>
    %40 = arith.mulf %36, %35 : vector<2x32xf32>
    %41 = arith.addf %39, %40 : vector<2x32xf32>
    %42 = math.tanh %41 : vector<2x32xf32>
    %43 = arith.mulf %38, %42 : vector<2x32xf32>
    %c0_21 = arith.constant 0 : index
    %c0_22 = arith.constant 0 : index
    %c0_23 = arith.constant 0 : index
    %44 = vector.load %arg14[%c0_21, %c0_22, %c0_23] : memref<2x2x32xf32, #tpu.memory_space<vmem>>, vector<1x2x32xf32>
    %45 = vector.shape_cast %44 : vector<1x2x32xf32> to vector<2x32xf32>
    %46 = vector.shape_cast %43 : vector<2x32xf32> to vector<1x2x32xf32>
    tpu.vector_store %arg14[%c0_21, %c0_22, %c0_23], %46 {strides = array<i32>} : memref<2x2x32xf32, #tpu.memory_space<vmem>>, vector<1x2x32xf32>,
    %c0_24 = arith.constant 0 : index
    %c0_25 = arith.constant 0 : index
    %c0_26 = arith.constant 0 : index
    %47 = vector.load %arg15[%c0_24, %c0_25, %c0_26] : memref<2x2x32xf32, #tpu.memory_space<vmem>>, vector<1x2x32xf32>
    %48 = vector.shape_cast %47 : vector<1x2x32xf32> to vector<2x32xf32>
    %49 = vector.shape_cast %41 : vector<2x32xf32> to vector<1x2x32xf32>
    tpu.vector_store %arg15[%c0_24, %c0_25, %c0_26], %49 {strides = array<i32>} : memref<2x2x32xf32, #tpu.memory_space<vmem>>, vector<1x2x32xf32>,
    %c1_27 = arith.constant 1 : index
    %c0_28 = arith.constant 0 : index
    %c0_29 = arith.constant 0 : index
    %50 = vector.load %arg14[%c1_27, %c0_28, %c0_29] : memref<2x2x32xf32, #tpu.memory_space<vmem>>, vector<1x2x32xf32>
    %51 = vector.shape_cast %50 : vector<1x2x32xf32> to vector<2x32xf32>
    %c1_30 = arith.constant 1 : index
    %c0_31 = arith.constant 0 : index
    %c0_32 = arith.constant 0 : index
    %52 = vector.load %arg15[%c1_30, %c0_31, %c0_32] : memref<2x2x32xf32, #tpu.memory_space<vmem>>, vector<1x2x32xf32>
    %53 = vector.shape_cast %52 : vector<1x2x32xf32> to vector<2x32xf32>
    %c0_33 = arith.constant 0 : index
    %c0_34 = arith.constant 0 : index
    %c0_35 = arith.constant 0 : index
    %54 = vector.load %arg6[%c0_33, %c0_34, %c0_35] : memref<1x32x128xf32, #tpu.memory_space<vmem>>, vector<1x32x128xf32>
    %55 = vector.shape_cast %54 : vector<1x32x128xf32> to vector<32x128xf32>
    %c1_36 = arith.constant 1 : index
    %c0_37 = arith.constant 0 : index
    %c0_38 = arith.constant 0 : index
    %56 = vector.load %arg7[%c1_36, %c0_37, %c0_38] : memref<2x32x128xf32, #tpu.memory_space<vmem>>, vector<1x32x128xf32>
    %57 = vector.shape_cast %56 : vector<1x32x128xf32> to vector<32x128xf32>
    %c1_39 = arith.constant 1 : index
    %c0_40 = arith.constant 0 : index
    %c0_41 = arith.constant 0 : index
    %58 = vector.load %arg8[%c1_39, %c0_40, %c0_41] : memref<2x1x128xf32, #tpu.memory_space<vmem>>, vector<1x1x128xf32>
    %59 = vector.shape_cast %58 : vector<1x1x128xf32> to vector<1x128xf32>
    %cst_42 = arith.constant dense<0.000000e+00> : vector<2x128xf32>
    %60 = tpu.matmul %43, %55, %cst_42 {dimension_numbers = #tpu.dot_dimension_numbers<[1], [0], [0], [1], [0, 0, 1, 1], [], []>} : vector<2x32xf32>, vector<32x128xf32>, vector<2x128xf32> -> vector<2x128xf32>
    %cst_43 = arith.constant dense<0.000000e+00> : vector<2x128xf32>
    %61 = tpu.matmul %51, %57, %cst_43 {dimension_numbers = #tpu.dot_dimension_numbers<[1], [0], [0], [1], [0, 0, 1, 1], [], []>} : vector<2x32xf32>, vector<32x128xf32>, vector<2x128xf32> -> vector<2x128xf32>
    %62 = arith.addf %60, %61 : vector<2x128xf32>
    %63 = vector.broadcast %59 : vector<1x128xf32> to vector<2x128xf32>
    %64 = arith.addf %62, %63 : vector<2x128xf32>
    %65 = vector.extract_strided_slice %64 {offsets = [0, 0], sizes = [2, 96], strides = [1, 1]} : vector<2x128xf32> to vector<2x96xf32>
    %66 = arith.negf %65 : vector<2x96xf32>
    %67 = math.exp %66 : vector<2x96xf32>
    %cst_44 = arith.constant 1.000000e+00 : f32
    %68 = vector.broadcast %cst_44 : f32 to vector<2x96xf32>
    %69 = arith.addf %68, %67 : vector<2x96xf32>
    %70 = arith.divf %68, %69 : vector<2x96xf32>
    %71 = vector.extract_strided_slice %64 {offsets = [0, 96], sizes = [2, 32], strides = [1, 1]} : vector<2x128xf32> to vector<2x32xf32>
    %72 = math.tanh %71 : vector<2x32xf32>
    %73 = vector.extract_strided_slice %70 {offsets = [0, 0], sizes = [2, 32], strides = [1, 1]} : vector<2x96xf32> to vector<2x32xf32>
    %74 = vector.extract_strided_slice %70 {offsets = [0, 32], sizes = [2, 32], strides = [1, 1]} : vector<2x96xf32> to vector<2x32xf32>
    %75 = vector.extract_strided_slice %70 {offsets = [0, 64], sizes = [2, 32], strides = [1, 1]} : vector<2x96xf32> to vector<2x32xf32>
    %76 = arith.mulf %74, %53 : vector<2x32xf32>
    %77 = arith.mulf %73, %72 : vector<2x32xf32>
    %78 = arith.addf %76, %77 : vector<2x32xf32>
    %79 = math.tanh %78 : vector<2x32xf32>
    %80 = arith.mulf %75, %79 : vector<2x32xf32>
    %c1_45 = arith.constant 1 : index
    %c0_46 = arith.constant 0 : index
    %c0_47 = arith.constant 0 : index
    %81 = vector.load %arg14[%c1_45, %c0_46, %c0_47] : memref<2x2x32xf32, #tpu.memory_space<vmem>>, vector<1x2x32xf32>
    %82 = vector.shape_cast %81 : vector<1x2x32xf32> to vector<2x32xf32>
    %83 = vector.shape_cast %80 : vector<2x32xf32> to vector<1x2x32xf32>
    tpu.vector_store %arg14[%c1_45, %c0_46, %c0_47], %83 {strides = array<i32>} : memref<2x2x32xf32, #tpu.memory_space<vmem>>, vector<1x2x32xf32>,
    %c1_48 = arith.constant 1 : index
    %c0_49 = arith.constant 0 : index
    %c0_50 = arith.constant 0 : index
    %84 = vector.load %arg15[%c1_48, %c0_49, %c0_50] : memref<2x2x32xf32, #tpu.memory_space<vmem>>, vector<1x2x32xf32>
    %85 = vector.shape_cast %84 : vector<1x2x32xf32> to vector<2x32xf32>
    %86 = vector.shape_cast %78 : vector<2x32xf32> to vector<1x2x32xf32>
    tpu.vector_store %arg15[%c1_48, %c0_49, %c0_50], %86 {strides = array<i32>} : memref<2x2x32xf32, #tpu.memory_space<vmem>>, vector<1x2x32xf32>,
    %c0_51 = arith.constant 0 : index
    %c0_52 = arith.constant 0 : index
    %87 = vector.load %arg9[%c0_51, %c0_52] : memref<32x128xf32, #tpu.memory_space<vmem>>, vector<32x128xf32>
    %cst_53 = arith.constant dense<0.000000e+00> : vector<2x128xf32>
    %88 = tpu.matmul %80, %87, %cst_53 {dimension_numbers = #tpu.dot_dimension_numbers<[1], [0], [0], [1], [0, 0, 1, 1], [], []>} : vector<2x32xf32>, vector<32x128xf32>, vector<2x128xf32> -> vector<2x128xf32>
    %c0_54 = arith.constant 0 : index
    %c0_55 = arith.constant 0 : index
    %89 = vector.load %arg10[%c0_54, %c0_55] : memref<1x128xf32, #tpu.memory_space<vmem>>, vector<1x128xf32>
    %90 = vector.broadcast %89 : vector<1x128xf32> to vector<2x128xf32>
    %91 = arith.addf %88, %90 : vector<2x128xf32>
    %c0_56 = arith.constant 0 : index
    %c0_57 = arith.constant 0 : index
    %c0_58 = arith.constant 0 : index
    %92 = vector.load %arg11[%c0_56, %c0_57, %c0_58] : memref<1x2x128xf32, #tpu.memory_space<vmem>>, vector<1x2x128xf32>
    %93 = vector.shape_cast %92 : vector<1x2x128xf32> to vector<2x128xf32>
    %94 = vector.shape_cast %91 : vector<2x128xf32> to vector<1x2x128xf32>
    tpu.vector_store %arg11[%c0_56, %c0_57, %c0_58], %94 {strides = array<i32>} : memref<1x2x128xf32, #tpu.memory_space<vmem>>, vector<1x2x128xf32>,
    %c0_i32_59 = arith.constant 0 : i32
    %95 = arith.cmpi eq, %arg0, %c0_i32_59 : i32
    %96 = arith.extui %95 : i1 to i32
    %c0_i32_60 = arith.constant 0 : i32
    %97 = arith.cmpi ne, %96, %c0_i32_60 : i32
    scf.if %97 {
      %c0_61 = arith.constant 0 : index
      %c0_62 = arith.constant 0 : index
      %c0_63 = arith.constant 0 : index
      %98 = vector.load %arg14[%c0_61, %c0_62, %c0_63] : memref<2x2x32xf32, #tpu.memory_space<vmem>>, vector<2x2x32xf32>
      %c0_64 = arith.constant 0 : index
      %c0_65 = arith.constant 0 : index
      %c0_66 = arith.constant 0 : index
      %99 = vector.load %arg12[%c0_64, %c0_65, %c0_66] : memref<2x2x32xf32, #tpu.memory_space<vmem>>, vector<2x2x32xf32>
      tpu.vector_store %arg12[%c0_64, %c0_65, %c0_66], %98 {strides = array<i32>} : memref<2x2x32xf32, #tpu.memory_space<vmem>>, vector<2x2x32xf32>,
      %c0_67 = arith.constant 0 : index
      %c0_68 = arith.constant 0 : index
      %c0_69 = arith.constant 0 : index
      %100 = vector.load %arg15[%c0_67, %c0_68, %c0_69] : memref<2x2x32xf32, #tpu.memory_space<vmem>>, vector<2x2x32xf32>
      %c0_70 = arith.constant 0 : index
      %c0_71 = arith.constant 0 : index
      %c0_72 = arith.constant 0 : index
      %101 = vector.load %arg13[%c0_70, %c0_71, %c0_72] : memref<2x2x32xf32, #tpu.memory_space<vmem>>, vector<2x2x32xf32>
      tpu.vector_store %arg13[%c0_70, %c0_71, %c0_72], %100 {strides = array<i32>} : memref<2x2x32xf32, #tpu.memory_space<vmem>>, vector<2x2x32xf32>,
    } else {
    }
    return
  }
  func.func @transform_0(%arg0: i32, %arg1: memref<1x2xi32, #tpu.memory_space<smem>>) -> (i32, i32, i32) {
    %c0_i32 = arith.constant 0 : i32
    %c0_i32_0 = arith.constant 0 : i32
    %c0_i32_1 = arith.constant 0 : i32
    %c0_i32_2 = arith.constant 0 : i32
    return %c0_i32, %c0_i32_0, %c0_i32_1 : i32, i32, i32
  }
  func.func @transform_1(%arg0: i32, %arg1: memref<1x2xi32, #tpu.memory_space<smem>>) -> (i32, i32, i32) {
    %c0_i32 = arith.constant 0 : i32
    %c0_i32_0 = arith.constant 0 : i32
    %c0_i32_1 = arith.constant 0 : i32
    %c0_i32_2 = arith.constant 0 : i32
    return %c0_i32, %c0_i32_0, %c0_i32_1 : i32, i32, i32
  }
  func.func @transform_2(%arg0: i32, %arg1: memref<1x2xi32, #tpu.memory_space<smem>>) -> (i32, i32, i32) {
    %c0_i32 = arith.constant 0 : i32
    %c0_i32_0 = arith.constant 0 : i32
    %c0_i32_1 = arith.constant 0 : i32
    %c0_i32_2 = arith.constant 0 : i32
    return %c0_i32, %c0_i32_0, %c0_i32_1 : i32, i32, i32
  }
  func.func @transform_3(%arg0: i32, %arg1: memref<1x2xi32, #tpu.memory_space<smem>>) -> (i32, i32) {
    %c0_i32 = arith.constant 0 : i32
    %c0_i32_0 = arith.constant 0 : i32
    %c0_i32_1 = arith.constant 0 : i32
    return %c0_i32, %c0_i32_0 : i32, i32
  }
  func.func @transform_4(%arg0: i32, %arg1: memref<1x2xi32, #tpu.memory_space<smem>>) -> (i32, i32, i32) {
    %c0_i32 = arith.constant 0 : i32
    %c0_i32_0 = arith.constant 0 : i32
    %c0_i32_1 = arith.constant 0 : i32
    %c0_i32_2 = arith.constant 0 : i32
    return %c0_i32, %c0_i32_0, %c0_i32_1 : i32, i32, i32
  }
  func.func @transform_5(%arg0: i32, %arg1: memref<1x2xi32, #tpu.memory_space<smem>>) -> (i32, i32, i32) {
    %c0_i32 = arith.constant 0 : i32
    %c0_i32_0 = arith.constant 0 : i32
    %c0_i32_1 = arith.constant 0 : i32
    %c0_i32_2 = arith.constant 0 : i32
    return %c0_i32, %c0_i32_0, %c0_i32_1 : i32, i32, i32
  }
  func.func @transform_6(%arg0: i32, %arg1: memref<1x2xi32, #tpu.memory_space<smem>>) -> (i32, i32, i32) {
    %c0_i32 = arith.constant 0 : i32
    %c0_i32_0 = arith.constant 0 : i32
    %c0_i32_1 = arith.constant 0 : i32
    %c0_i32_2 = arith.constant 0 : i32
    return %c0_i32, %c0_i32_0, %c0_i32_1 : i32, i32, i32
  }
  func.func @transform_7(%arg0: i32, %arg1: memref<1x2xi32, #tpu.memory_space<smem>>) -> (i32, i32) {
    %c0_i32 = arith.constant 0 : i32
    %c0_i32_0 = arith.constant 0 : i32
    %c0_i32_1 = arith.constant 0 : i32
    return %c0_i32, %c0_i32_0 : i32, i32
  }
  func.func @transform_8(%arg0: i32, %arg1: memref<1x2xi32, #tpu.memory_space<smem>>) -> (i32, i32) {
    %c0_i32 = arith.constant 0 : i32
    %c0_i32_0 = arith.constant 0 : i32
    %c0_i32_1 = arith.constant 0 : i32
    return %c0_i32, %c0_i32_0 : i32, i32
  }
  func.func @transform_9(%arg0: i32, %arg1: memref<1x2xi32, #tpu.memory_space<smem>>) -> (i32, i32, i32) {
    %c0_i32 = arith.constant 0 : i32
    %c0_i32_0 = arith.constant 0 : i32
    %c0_i32_1 = arith.constant 0 : i32
    return %arg0, %c0_i32, %c0_i32_0 : i32, i32, i32
  }
  func.func @transform_10(%arg0: i32, %arg1: memref<1x2xi32, #tpu.memory_space<smem>>) -> (i32, i32, i32) {
    %c0_i32 = arith.constant 0 : i32
    %c0_i32_0 = arith.constant 0 : i32
    %c0_i32_1 = arith.constant 0 : i32
    %c0_i32_2 = arith.constant 0 : i32
    return %c0_i32, %c0_i32_0, %c0_i32_1 : i32, i32, i32
  }
  func.func @transform_11(%arg0: i32, %arg1: memref<1x2xi32, #tpu.memory_space<smem>>) -> (i32, i32, i32) {
    %c0_i32 = arith.constant 0 : i32
    %c0_i32_0 = arith.constant 0 : i32
    %c0_i32_1 = arith.constant 0 : i32
    %c0_i32_2 = arith.constant 0 : i32
    return %c0_i32, %c0_i32_0, %c0_i32_1 : i32, i32, i32
  }
}

</mosaic_0001>

<llo_original>
// kernel: fwd.1
$region0: #{fwd.1}
  #allocation0 [shape = 'u32[]', space=smem, size = 0x4, offset = 0x4, fixed_abs, tag = 'smem constant byte address 0x4 - core index']
  #allocation1 [shape = 'u32[72,128]{1,0:T(1,128)}', space=vmem, size = 0x9000, scoped, tag = 'internal scratch']
  #allocation2 [shape = 'f32[2,2,32]{2,1,0:T(2,128)}', space=vmem, size = 0x800, scoped, tag = 'scratch operand']
  #allocation3 [shape = 'f32[2,2,32]{2,1,0:T(2,128)}', space=vmem, size = 0x800, scoped, tag = 'scratch operand']
  #allocation4 [shape = 's32[1]{0}', space=sflag, size = 0x4, scoped, tag = 'scoped memory for fwd.1']
  #allocation5 [shape = 'u8[512]{0}', space=smem, size = 0x200, scoped, tag = 'prefetched SMEM operand 0']
  %s0 = inlined_call_operand.vmem [shape: s32[1,2], index: 0, kind: input, shape index: {}]
  %s1 = inlined_call_operand.vmem [shape: f32[50,1,32], index: 1, kind: input, shape index: {}]
  %s2 = inlined_call_operand.vmem [shape: f32[2,2,32], index: 2, kind: input, shape index: {}, may-alias: {2,11}]
  %s3 = inlined_call_operand.vmem [shape: f32[2,2,32], index: 3, kind: input, shape index: {}, may-alias: {3,12}]
  %s4 = inlined_call_operand.hbm [shape: f32[32,128], index: 4, kind: input, shape index: {}]
  %s5 = inlined_call_operand.hbm [shape: f32[1,32,128], index: 5, kind: input, shape index: {}]
  %s6 = inlined_call_operand.vmem [shape: f32[2,32,128], index: 6, kind: input, shape index: {}]
  %s7 = inlined_call_operand.vmem [shape: f32[2,1,128], index: 7, kind: input, shape index: {}]
  %s8 = inlined_call_operand.hbm [shape: f32[32,128], index: 8, kind: input, shape index: {}]
  %s9 = inlined_call_operand.vmem [shape: f32[1,128], index: 9, kind: input, shape index: {}]
  %s10 = inlined_call_operand.vmem [shape: f32[1,2,128], index: 10, kind: output, shape index: {0}]
  %s11 = inlined_call_operand.vmem [shape: f32[2,2,32], index: 11, kind: output, shape index: {1}, may-alias: {2,11}]
  %s12 = inlined_call_operand.vmem [shape: f32[2,2,32], index: 12, kind: output, shape index: {2}, may-alias: {3,12}]
  %13 = xla_tuple %s10, %s11, %s12
  %s14 = sld [smem:[#allocation0]]
  $region82: #{fwd.1} parent=0
    _
  %s16 = ssub.s32 1, %s14
  %s17 = scalar_select 0, %s16, %s14
  %s19 = sshll.u32 %s0, 4
  %s20 = int_to_ptr.vmem [resolvable:$true] %s19
  %22 = dma.vmem_to_smem %s20, 16, [#allocation5], [#allocation4]
  %24 = dma.done [#allocation4], 16
  %25 = sfence
  $region1: #{fwd.1} parent=0
    #allocation6 [shape = 'u8[16384]{0}', space=vmem, size = 0x4000, scoped, tag = 'input window, operand 4, single buffered']
    #allocation7 [shape = 's32[1]{0}', space=sflag, size = 0x4, scoped, tag = 'scoped memory for fwd.1']
    #allocation8 [shape = 'u8[16384]{0}', space=vmem, size = 0x4000, scoped, tag = 'input window, operand 5, single buffered']
    #allocation9 [shape = 's32[1]{0}', space=sflag, size = 0x4, scoped, tag = 'scoped memory for fwd.1']
    #allocation10 [shape = 'u8[16384]{0}', space=vmem, size = 0x4000, scoped, tag = 'input window, operand 8, single buffered']
    %26 = vsyncpa [#allocation7], 0
    %27 = vsyncpa [#allocation9], 0
    // Predicated region
    $region2: #{fwd.1} parent=1 // pred_check
      _
    $region3: #{fwd.1} parent=1 // pred_check_branch
      %29 = sbr.rel (0) target = $region5
    $region4: #{fwd.1} parent=1 // pred_region
      _
    $region5: #{fwd.1} parent=1 // pred_fallthru
      _
    // Predicated region
    $region6: #{fwd.1} parent=1 // pred_check
      _
    $region7: #{fwd.1} parent=1 // pred_check_branch
      %31 = sbr.rel (0) target = $region9
    $region8: #{fwd.1} parent=1 // pred_region
      _
    $region9: #{fwd.1} parent=1 // pred_fallthru
      _
    // Predicated region
    $region10: #{fwd.1} parent=1 // pred_check
      _
    $region11: #{fwd.1} parent=1 // pred_check_branch
      %33 = sbr.rel (0) target = $region13
    $region12: #{fwd.1} parent=1 // pred_region
      _
    $region13: #{fwd.1} parent=1 // pred_fallthru
      _
    // Predicated region
    $region14: #{fwd.1} parent=1 // pred_check
      _
    $region15: #{fwd.1} parent=1 // pred_check_branch
      %35 = sbr.rel (0) target = $region17
    $region16: #{fwd.1} parent=1 // pred_region
      %37 = vsyncadd [#allocation7], 0
      %s38 = sshll.u32 %s4, 4
      %s39 = int_to_ptr.hbm [resolvable:$true] %s38
      %s40 = sshll.u32 [#allocation6], 4
      %s41 = int_to_ptr.vmem [resolvable:$true] %s40
      %46 = dma.hbm_to_vmem [thread:$0]  %s39, 512, %s41, [#allocation7], 128, 128, 8
    $region17: #{fwd.1} parent=1 // pred_fallthru
      _
    // Predicated region
    $region18: #{fwd.1} parent=1 // pred_check
      _
    $region19: #{fwd.1} parent=1 // pred_check_branch
      %48 = sbr.rel (0) target = $region21
    $region20: #{fwd.1} parent=1 // pred_region
      %50 = vsyncadd [#allocation9], 0
      %s51 = sshll.u32 %s5, 4
      %s52 = int_to_ptr.hbm [resolvable:$true] %s51
      %s53 = sshll.u32 [#allocation8], 4
      %s54 = int_to_ptr.vmem [resolvable:$true] %s53
      %59 = dma.hbm_to_vmem [thread:$0]  %s52, 512, %s54, [#allocation9], 128, 128, 8
    $region21: #{fwd.1} parent=1 // pred_fallthru
      _
    // Predicated region
    $region22: #{fwd.1} parent=1 // pred_check
      _
    $region23: #{fwd.1} parent=1 // pred_check_branch
      %61 = sbr.rel (0) target = $region25
    $region24: #{fwd.1} parent=1 // pred_region
      _
    $region25: #{fwd.1} parent=1 // pred_fallthru
      _
    // Predicated region
    $region26: #{fwd.1} parent=1 // pred_check
      _
    $region27: #{fwd.1} parent=1 // pred_check_branch
      %63 = sbr.rel (0) target = $region29
    $region28: #{fwd.1} parent=1 // pred_region
      _
    $region29: #{fwd.1} parent=1 // pred_fallthru
      _
    // Predicated region
    $region30: #{fwd.1} parent=1 // pred_check
      _
    $region31: #{fwd.1} parent=1 // pred_check_branch
      %65 = sbr.rel (0) target = $region33
    $region32: #{fwd.1} parent=1 // pred_region
      %67 = vsyncadd [#allocation9], 0
      %s68 = sshll.u32 %s8, 4
      %s69 = int_to_ptr.hbm [resolvable:$true] %s68
      %s70 = sshll.u32 [#allocation10], 4
      %s71 = int_to_ptr.vmem [resolvable:$true] %s70
      %76 = dma.hbm_to_vmem [thread:$0]  %s69, 512, %s71, [#allocation9], 128, 128, 8
    $region33: #{fwd.1} parent=1 // pred_fallthru
      _
    // Predicated region
    $region34: #{fwd.1} parent=1 // pred_check
      _
    $region35: #{fwd.1} parent=1 // pred_check_branch
      %78 = sbr.rel (0) target = $region37
    $region36: #{fwd.1} parent=1 // pred_region
      _
    $region37: #{fwd.1} parent=1 // pred_fallthru
      _
    // Predicated region
    $region38: #{fwd.1} parent=1 // pred_check
      _
    $region39: #{fwd.1} parent=1 // pred_check_branch
      %80 = sbr.rel (0) target = $region41
    $region40: #{fwd.1} parent=1 // pred_region
      %82 = dma.done [#allocation7], 512
    $region41: #{fwd.1} parent=1 // pred_fallthru
      _
    // Predicated region
    $region42: #{fwd.1} parent=1 // pred_check
      _
    $region43: #{fwd.1} parent=1 // pred_check_branch
      %84 = sbr.rel (0) target = $region45
    $region44: #{fwd.1} parent=1 // pred_region
      %86 = dma.done [#allocation9], 512
    $region45: #{fwd.1} parent=1 // pred_fallthru
      _
    // Predicated region
    $region46: #{fwd.1} parent=1 // pred_check
      _
    $region47: #{fwd.1} parent=1 // pred_check_branch
      %88 = sbr.rel (0) target = $region49
    $region48: #{fwd.1} parent=1 // pred_region
      %90 = dma.done [#allocation9], 512
    $region49: #{fwd.1} parent=1 // pred_fallthru
      _
    %p91 = scmp.eq.s32.totalorder 0, 0
    // Predicated region
    $region50: #{fwd.1} parent=1 // pred_check
      %p92 = pneg %p91
    $region51: #{fwd.1} parent=1 // pred_check_branch
      %94 = sbr.rel (%p92) target = $region53
    $region52: #{fwd.1} parent=1 // pred_region
      %v95 = vld [vmem:[%s2] sm:$0x3]
      %v96 = vld [vmem:[%s2 + $0x2] sm:$0x3]
      %vm97 = vcmask 254976
      %98 = vst.msk [vmem:[#allocation2] sm:$0x3] %vm97, %v95
      %99 = vst.msk [vmem:[#allocation2 + $0x2] sm:$0x3] %vm97, %v96
      %v100 = vld [vmem:[%s3] sm:$0x3]
      %v101 = vld [vmem:[%s3 + $0x2] sm:$0x3]
      %102 = vst.msk [vmem:[#allocation3] sm:$0x3] %vm97, %v100
      %103 = vst.msk [vmem:[#allocation3 + $0x2] sm:$0x3] %vm97, %v101
    $region53: #{fwd.1} parent=1 // pred_fallthru
      _
    %s104 = smul.u32 0, 128
    %s105 = sld [smem:[#allocation5 + %s104]]
    %s106 = scalar_lea.vmem %s1, %s105
    %v107 = vld [vmem:[%s106] sm:$0x1]
    %s108 = sadd.s32 %s104, 1
    %s109 = sld [smem:[#allocation5 + %s108]]
    %s110 = scalar_lea.vmem %s1, %s109
    %v111 = vld [vmem:[%s110] sm:$0x1]
    %v113 = vperm.slane %v111, 0
    %vm115 = vcmask 1040384
    %v116 = vsel %vm115, %v107, %v113
    %v117 = vld [vmem:[#allocation2] sm:$0x3]
    %v118 = vld [vmem:[#allocation3] sm:$0x3]
    %v119 = vld [vmem:[#allocation6] sm:$0xff]
    %v120 = vld [vmem:[#allocation6 + $0x8] sm:$0xff]
    %v121 = vld [vmem:[#allocation6 + $0x10] sm:$0xff]
    %v122 = vld [vmem:[#allocation6 + $0x18] sm:$0xff]
    %v123 = vld [vmem:[%s6] sm:$0xff]
    %v124 = vld [vmem:[%s6 + $0x8] sm:$0xff]
    %v125 = vld [vmem:[%s6 + $0x10] sm:$0xff]
    %v126 = vld [vmem:[%s6 + $0x18] sm:$0xff]
    %v127 = vld [vmem:[%s7] sm:$0x1]
    %vm128 = vcmask 261120
    %v130 = vsel %vm128, %v117, 0
    %132 = vmatpush.msra.mxu0 0.0
    %133 = vmatpush.msra.mxu0 0.0
    %134 = vmatpush.msra.mxu0 0.0
    %135 = vmatpush.msra.mxu0 0.0
    %136 = vmatpush.msra.mxu0 0.0
    %137 = vmatpush.msra.mxu0 0.0
    %138 = vmatpush.msra.mxu0 0.0
    %139 = vmatpush.msra.mxu0 0.0
    %140 = vmatpush.msra.mxu0 0.0
    %141 = vmatpush.msra.mxu0 0.0
    %142 = vmatpush.msra.mxu0 0.0
    %143 = vmatpush.msra.mxu0 0.0
    %144 = vmatpush.msra.mxu0 %v126
    %145 = vmatpush.msra.mxu0 %v125
    %146 = vmatpush.msra.mxu0 %v124
    %147 = vmatpush.msra.mxu0 %v123
    %148 = vmatmul.f32.gmra.mxu0 %v130
    %v149 = vpop.f32.mrf.mxu0
    %v150 = vadd.f32 0.0, %v149
    %151 = vdwg.mxu0
    %v153 = vsel %vm128, %v116, 0
    %155 = vmatpush.msra.mxu0 0.0
    %156 = vmatpush.msra.mxu0 0.0
    %157 = vmatpush.msra.mxu0 0.0
    %158 = vmatpush.msra.mxu0 0.0
    %159 = vmatpush.msra.mxu0 0.0
    %160 = vmatpush.msra.mxu0 0.0
    %161 = vmatpush.msra.mxu0 0.0
    %162 = vmatpush.msra.mxu0 0.0
    %163 = vmatpush.msra.mxu0 0.0
    %164 = vmatpush.msra.mxu0 0.0
    %165 = vmatpush.msra.mxu0 0.0
    %166 = vmatpush.msra.mxu0 0.0
    %167 = vmatpush.msra.mxu0 %v122
    %168 = vmatpush.msra.mxu0 %v121
    %169 = vmatpush.msra.mxu0 %v120
    %170 = vmatpush.msra.mxu0 %v119
    %171 = vmatmul.f32.gmra.mxu0 %v153
    %v172 = vpop.f32.mrf.mxu0
    %v173 = vadd.f32 %v150, %v172
    %174 = vdwg.mxu0
    %v176 = vperm.slane %v127, 0
    %v178 = vadd.f32 %v173, %v176
    %v179 = vxor.u32 %v178, 2147483648
    %v180 = vmul.f32 %v179, 1.442695
    %v181 = vpow.pop %v180
    %v182 = vadd.f32 %v181, 1.0
    %v183 = vrcp.pop %v182
    %v184 = vmul.f32 %v182, %v183
    %v185 = vsub.f32 1.0, %v184
    %v186 = vmul.f32 %v183, %v185
    %v187 = vadd.f32 %v183, %v186
    %vm188 = vweird.f32 %v182
    %vm189 = vweird.f32 %v183
    %vm190 = vmor %vm188, %vm189
    %v191 = vsel %vm190, %v183, %v187
    %v192 = vand.u32 2147483647, %v182
    %vm193 = vcmp.eq.f32.partialorder %v192, 8.507059e+37
    %v194 = vand.u32 %v182, 2147483648
    %v195 = vor.u32 1.1754944e-38, %v194
    %v196 = vsel %vm193, %v195, %v191
    %v197 = vmul.f32 1.0, %v196
    %v198 = vtanh.pop %v178
    %200 = vrot.lane.b32.xlu0 %v118, 32
    %v201 = vpop.permute.xlu0 %200
    %v203 = vmul.f32 %v197, %v201
    %205 = vrot.lane.b32.xlu0 %v198, 32
    %v206 = vpop.permute.xlu0 %205
    %v208 = vmul.f32 %v197, %v206
    %210 = vrot.lane.b32.xlu0 %v208, 32
    %v211 = vpop.permute.xlu0 %210
    %v213 = vadd.f32 %v203, %v211
    %v214 = vtanh.pop %v213
    %216 = vrot.lane.b32.xlu0 %v214, 32
    %v217 = vpop.permute.xlu0 %216
    %v219 = vmul.f32 %v197, %v217
    %221 = vrot.lane.b32.xlu0 %v219, 64
    %v222 = vpop.permute.xlu0 %221
    %vm224 = vcmask 254976
    %225 = vst.msk [vmem:[#allocation2] sm:$0x3] %vm224, %v222
    %227 = vrot.lane.b32.xlu0 %v213, 96
    %v228 = vpop.permute.xlu0 %227
    %230 = vst.msk [vmem:[#allocation3] sm:$0x3] %vm224, %v228
    %s231 = scalar_lea.vmem [#allocation2], 2
    %v232 = vld [vmem:[%s231] sm:$0x3]
    %s233 = scalar_lea.vmem [#allocation3], 2
    %v234 = vld [vmem:[%s233] sm:$0x3]
    %v235 = vld [vmem:[#allocation8] sm:$0xff]
    %v236 = vld [vmem:[#allocation8 + $0x8] sm:$0xff]
    %v237 = vld [vmem:[#allocation8 + $0x10] sm:$0xff]
    %v238 = vld [vmem:[#allocation8 + $0x18] sm:$0xff]
    %s239 = scalar_lea.vmem %s6, 32
    %v240 = vld [vmem:[%s239] sm:$0xff]
    %v241 = vld [vmem:[%s239 + $0x8] sm:$0xff]
    %v242 = vld [vmem:[%s239 + $0x10] sm:$0xff]
    %v243 = vld [vmem:[%s239 + $0x18] sm:$0xff]
    %s244 = scalar_lea.vmem %s7, 1
    %v245 = vld [vmem:[%s244] sm:$0x1]
    %v247 = vsel %vm128, %v232, 0
    %249 = vmatpush.msra.mxu0 0.0
    %250 = vmatpush.msra.mxu0 0.0
    %251 = vmatpush.msra.mxu0 0.0
    %252 = vmatpush.msra.mxu0 0.0
    %253 = vmatpush.msra.mxu0 0.0
    %254 = vmatpush.msra.mxu0 0.0
    %255 = vmatpush.msra.mxu0 0.0
    %256 = vmatpush.msra.mxu0 0.0
    %257 = vmatpush.msra.mxu0 0.0
    %258 = vmatpush.msra.mxu0 0.0
    %259 = vmatpush.msra.mxu0 0.0
    %260 = vmatpush.msra.mxu0 0.0
    %261 = vmatpush.msra.mxu0 %v243
    %262 = vmatpush.msra.mxu0 %v242
    %263 = vmatpush.msra.mxu0 %v241
    %264 = vmatpush.msra.mxu0 %v240
    %265 = vmatmul.f32.gmra.mxu0 %v247
    %v266 = vpop.f32.mrf.mxu0
    %v267 = vadd.f32 0.0, %v266
    %268 = vdwg.mxu0
    %v269 = vsel %vm128, %v222, 0
    %271 = vmatpush.msra.mxu0 0.0
    %272 = vmatpush.msra.mxu0 0.0
    %273 = vmatpush.msra.mxu0 0.0
    %274 = vmatpush.msra.mxu0 0.0
    %275 = vmatpush.msra.mxu0 0.0
    %276 = vmatpush.msra.mxu0 0.0
    %277 = vmatpush.msra.mxu0 0.0
    %278 = vmatpush.msra.mxu0 0.0
    %279 = vmatpush.msra.mxu0 0.0
    %280 = vmatpush.msra.mxu0 0.0
    %281 = vmatpush.msra.mxu0 0.0
    %282 = vmatpush.msra.mxu0 0.0
    %283 = vmatpush.msra.mxu0 %v238
    %284 = vmatpush.msra.mxu0 %v237
    %285 = vmatpush.msra.mxu0 %v236
    %286 = vmatpush.msra.mxu0 %v235
    %287 = vmatmul.f32.gmra.mxu0 %v269
    %v288 = vpop.f32.mrf.mxu0
    %v289 = vadd.f32 %v267, %v288
    %290 = vdwg.mxu0
    %v292 = vperm.slane %v245, 0
    %v294 = vadd.f32 %v289, %v292
    %v295 = vxor.u32 %v294, 2147483648
    %v296 = vmul.f32 %v295, 1.442695
    %v297 = vpow.pop %v296
    %v298 = vadd.f32 %v297, 1.0
    %v299 = vrcp.pop %v298
    %v300 = vmul.f32 %v298, %v299
    %v301 = vsub.f32 1.0, %v300
    %v302 = vmul.f32 %v299, %v301
    %v303 = vadd.f32 %v299, %v302
    %vm304 = vweird.f32 %v298
    %vm305 = vweird.f32 %v299
    %vm306 = vmor %vm304, %vm305
    %v307 = vsel %vm306, %v299, %v303
    %v308 = vand.u32 2147483647, %v298
    %vm309 = vcmp.eq.f32.partialorder %v308, 8.507059e+37
    %v310 = vand.u32 %v298, 2147483648
    %v311 = vor.u32 1.1754944e-38, %v310
    %v312 = vsel %vm309, %v311, %v307
    %v313 = vmul.f32 1.0, %v312
    %v314 = vtanh.pop %v294
    %316 = vrot.lane.b32.xlu0 %v234, 32
    %v317 = vpop.permute.xlu0 %316
    %v319 = vmul.f32 %v313, %v317
    %321 = vrot.lane.b32.xlu0 %v314, 32
    %v322 = vpop.permute.xlu0 %321
    %v324 = vmul.f32 %v313, %v322
    %326 = vrot.lane.b32.xlu0 %v324, 32
    %v327 = vpop.permute.xlu0 %326
    %v329 = vadd.f32 %v319, %v327
    %v330 = vtanh.pop %v329
    %332 = vrot.lane.b32.xlu0 %v330, 32
    %v333 = vpop.permute.xlu0 %332
    %v335 = vmul.f32 %v313, %v333
    %337 = vrot.lane.b32.xlu0 %v335, 64
    %v338 = vpop.permute.xlu0 %337
    %340 = vst.msk [vmem:[%s231] sm:$0x3] %vm224, %v338
    %342 = vrot.lane.b32.xlu0 %v329, 96
    %v343 = vpop.permute.xlu0 %342
    %345 = vst.msk [vmem:[%s233] sm:$0x3] %vm224, %v343
    %v346 = vld [vmem:[#allocation10] sm:$0xff]
    %v347 = vld [vmem:[#allocation10 + $0x8] sm:$0xff]
    %v348 = vld [vmem:[#allocation10 + $0x10] sm:$0xff]
    %v349 = vld [vmem:[#allocation10 + $0x18] sm:$0xff]
    %v350 = vld [vmem:[%s9] sm:$0x1]
    %v352 = vperm.slane %v350, 0
    %v354 = vsel %vm128, %v338, 0
    %356 = vmatpush.msra.mxu0 0.0
    %357 = vmatpush.msra.mxu0 0.0
    %358 = vmatpush.msra.mxu0 0.0
    %359 = vmatpush.msra.mxu0 0.0
    %360 = vmatpush.msra.mxu0 0.0
    %361 = vmatpush.msra.mxu0 0.0
    %362 = vmatpush.msra.mxu0 0.0
    %363 = vmatpush.msra.mxu0 0.0
    %364 = vmatpush.msra.mxu0 0.0
    %365 = vmatpush.msra.mxu0 0.0
    %366 = vmatpush.msra.mxu0 0.0
    %367 = vmatpush.msra.mxu0 0.0
    %368 = vmatpush.msra.mxu0 %v349
    %369 = vmatpush.msra.mxu0 %v348
    %370 = vmatpush.msra.mxu0 %v347
    %371 = vmatpush.msra.mxu0 %v346
    %372 = vmatmul.f32.gmra.mxu0 %v354
    %v373 = vpop.f32.mrf.mxu0
    %v374 = vadd.f32 %v352, %v373
    %375 = vdwg.mxu0
    %376 = vst [vmem:[%s10] sm:$0x3] %v374
    // Predicated region
    $region54: #{fwd.1} parent=1 // pred_check
      %p377 = pneg %p91
    $region55: #{fwd.1} parent=1 // pred_check_branch
      %379 = sbr.rel (%p377) target = $region57
    $region56: #{fwd.1} parent=1 // pred_region
      %v380 = vld [vmem:[#allocation2] sm:$0x3]
      %v381 = vld [vmem:[#allocation2 + $0x2] sm:$0x3]
      %382 = vst.msk [vmem:[%s11] sm:$0x3] %vm224, %v380
      %383 = vst.msk [vmem:[%s11 + $0x2] sm:$0x3] %vm224, %v381
      %v384 = vld [vmem:[#allocation3] sm:$0x3]
      %v385 = vld [vmem:[#allocation3 + $0x2] sm:$0x3]
      %386 = vst.msk [vmem:[%s12] sm:$0x3] %vm224, %v384
      %387 = vst.msk [vmem:[%s12 + $0x2] sm:$0x3] %vm224, %v385
    $region57: #{fwd.1} parent=1 // pred_fallthru
      _
    // Predicated region
    $region58: #{fwd.1} parent=1 // pred_check
      _
    $region59: #{fwd.1} parent=1 // pred_check_branch
      %389 = sbr.rel (0) target = $region61
    $region60: #{fwd.1} parent=1 // pred_region
      _
    $region61: #{fwd.1} parent=1 // pred_fallthru
      _
    // Predicated region
    $region62: #{fwd.1} parent=1 // pred_check
      _
    $region63: #{fwd.1} parent=1 // pred_check_branch
      %391 = sbr.rel (0) target = $region65
    $region64: #{fwd.1} parent=1 // pred_region
      _
    $region65: #{fwd.1} parent=1 // pred_fallthru
      _
    // Predicated region
    $region66: #{fwd.1} parent=1 // pred_check
      _
    $region67: #{fwd.1} parent=1 // pred_check_branch
      %393 = sbr.rel (0) target = $region69
    $region68: #{fwd.1} parent=1 // pred_region
      _
    $region69: #{fwd.1} parent=1 // pred_fallthru
      _
    // Predicated region
    $region70: #{fwd.1} parent=1 // pred_check
      _
    $region71: #{fwd.1} parent=1 // pred_check_branch
      %395 = sbr.rel (0) target = $region73
    $region72: #{fwd.1} parent=1 // pred_region
      _
    $region73: #{fwd.1} parent=1 // pred_fallthru
      _
    // Predicated region
    $region74: #{fwd.1} parent=1 // pred_check
      _
    $region75: #{fwd.1} parent=1 // pred_check_branch
      %397 = sbr.rel (0) target = $region77
    $region76: #{fwd.1} parent=1 // pred_region
      _
    $region77: #{fwd.1} parent=1 // pred_fallthru
      _
    // Predicated region
    $region78: #{fwd.1} parent=1 // pred_check
      _
    $region79: #{fwd.1} parent=1 // pred_check_branch
      %399 = sbr.rel (0) target = $region81
    $region80: #{fwd.1} parent=1 // pred_region
      _
    $region81: #{fwd.1} parent=1 // pred_fallthru
      _
    %400 = vsyncpa [#allocation7], 1
    %401 = vsyncpa [#allocation9], 1

</llo_original>
